<compile_context>
chip_gen: v7x
topology: tpu7x:2x2x1
jax: 0.10.0
libtpu: 0.0.40
codegen_flags: <defaults>
</compile_context>

<pallas_src>
import functools
import math

import jax
import jax.numpy as jnp
from jax.experimental import pallas as pl
from jax.experimental.pallas import tpu as pltpu


def _silu(h):
    # SiLU(h) = h * sigmoid(h) = h * 1/(1 + exp(-h)); exp and the approx reciprocal
    # both go to the EUP, keeping the VALU path short.
    return h * pl.reciprocal(1.0 + jnp.exp(-h), approx=True)


def _round_up(n, m):
    return ((n + m - 1) // m) * m


def _cdiv(a, b):
    return -(-a // b)


def mlp_kernel(x_ref, w1_ref, b1_ref, w2_ref, b2_ref, g_ref, beta_ref,
               o_ref, xbf_ref, acc_ref=None, *, eps):
    h_idx = pl.program_id(1)
    # For f32 outputs we accumulate straight into the VMEM-resident output block.
    acc = o_ref if acc_ref is None else acc_ref

    @pl.when(h_idx == 0)
    def _():
        xbf_ref[...] = x_ref[...].astype(jnp.bfloat16)   # one bf16 cast per row tile
        acc[...] = jnp.zeros_like(acc)

    # ---- Linear1 + SiLU on this hidden tile (bf16 MXU operands, f32 accumulate) ----
    h = jnp.dot(xbf_ref[...], w1_ref[...],
                preferred_element_type=jnp.float32)                 # (tm, th) f32
    h = _silu(h + b1_ref[...])

    # ---- Linear2 partial sum over this hidden tile ----
    acc[...] += jnp.dot(h.astype(jnp.bfloat16), w2_ref[...],
                        preferred_element_type=jnp.float32)         # (tm, C) f32

    # ---- Finalize on the last hidden tile: bias2 + residual + LayerNorm ----
    @pl.when(h_idx == pl.num_programs(1) - 1)
    def _():
        y = x_ref[...].astype(jnp.float32) + acc[...].astype(jnp.float32) + b2_ref[...]
        mean = jnp.mean(y, axis=-1, keepdims=True)
        yc = y - mean
        var = jnp.mean(yc * yc, axis=-1, keepdims=True)
        out = yc * jax.lax.rsqrt(var + eps) * g_ref[...] + beta_ref[...]
        o_ref[...] = out.astype(o_ref.dtype)


def _vmem_limit_bytes():
    """Generation-aware VMEM budget: ~48 MiB on v7x (64 MiB phys), ~100 MiB on v5e/v6e."""
    cap = 64 << 20  # conservative fallback = v7x physical capacity
    try:
        info = pltpu.get_tpu_info()
        cap = int(getattr(info, "vmem_capacity_bytes", cap))
    except Exception:
        pass
    limit = min(int(cap * 0.78), cap - (16 << 20))
    return max(limit, 32 << 20)


def _tile_bytes(tm, th, C, use_acc):
    """Rough VMEM footprint with double-buffered ins/outs + scratch."""
    x_in = 2 * tm * C * 4
    w1 = 2 * C * th * 2
    w2 = 2 * th * C * 2
    small = 2 * (th * 4) + 3 * 2 * (C * 4)
    out = 2 * tm * C * 4
    xbf = tm * C * 2
    acc = tm * C * 4 if use_acc else 0
    return x_in + w1 + w2 + small + out + xbf + acc


def mlp_forward(x, w1, b1, w2, b2, gamma, beta, *, eps=1e-5, tm=512):
    """x: (..., C). w1: (C, H), b1: (H,), w2: (H, C), b2: (C,), gamma/beta: (C,)."""
    orig_shape = x.shape
    C = orig_shape[-1]
    H = w1.shape[1]
    M = math.prod(orig_shape[:-1]) if len(orig_shape) > 1 else 1

    x2d = x.reshape(M, C)
    out_dtype = x.dtype
    use_acc = out_dtype != jnp.float32  # f32 outputs accumulate directly into o_ref

    # ---- Row tile: large, multiple of 8 sublanes; keep >=2 tiles so both v7x TCs work.
    tm_eff = min(tm, _round_up(M, 8))
    if M > 8 and _cdiv(M, tm_eff) < 2:
        tm_eff = max(8, _round_up(_cdiv(M, 2), 8))

    # ---- Hidden tile: 512 / 256 / 128 only (clean 256-wide-MXU tiling, never 384).
    if H <= 128:
        th = 128
    elif H <= 256:
        th = 256
    else:
        th = 512

    # ---- Derate tiles to the generation-aware VMEM budget (th first, then tm).
    vmem_limit = _vmem_limit_bytes()
    tile_budget = vmem_limit - (4 << 20)
    while _tile_bytes(tm_eff, th, C, use_acc) > tile_budget and th > 128:
        th //= 2
    while _tile_bytes(tm_eff, th, C, use_acc) > tile_budget and tm_eff > 8:
        tm_eff = max(8, _round_up(tm_eff // 2, 8))

    # ---- Pad the hidden dim (only) to a tile multiple; padded units contribute 0.
    H_pad = _round_up(H, th)
    if H_pad != H:
        w1 = jnp.pad(w1, ((0, 0), (0, H_pad - H)))
        b1 = jnp.pad(b1, ((0, H_pad - H),))
        w2 = jnp.pad(w2, ((0, H_pad - H), (0, 0)))

    grid_m = _cdiv(M, tm_eff)
    grid_h = H_pad // th
    grid = (grid_m, grid_h)

    # bf16 weights for the MXU fast path; small params stay f32 for the VPU epilogue.
    w1_bf = w1.astype(jnp.bfloat16)
    w2_bf = w2.astype(jnp.bfloat16)
    b1_2d = b1.reshape(1, H_pad).astype(jnp.float32)
    b2_2d = b2.reshape(1, C).astype(jnp.float32)
    g_2d = gamma.reshape(1, C).astype(jnp.float32)
    beta_2d = beta.reshape(1, C).astype(jnp.float32)

    cost = pl.CostEstimate(
        flops=4 * M * C * H,                                   # two matmuls
        transcendentals=M * H,                                 # exp in SiLU
        bytes_accessed=(M * C * 4                              # x in
                        + M * C * 4                            # out
                        + grid_m * 2 * (C * H_pad + H_pad * C) # weights re-read per m tile
                        + H_pad * 4 + 3 * C * 4),              # biases / gamma / beta
    )

    scratch_shapes = [pltpu.VMEM((tm_eff, C), jnp.bfloat16)]   # cached bf16 x tile
    if use_acc:
        scratch_shapes.append(pltpu.VMEM((tm_eff, C), jnp.float32))

    # TODO(synk): on v5e, pipeline_mode=pl.Buffered(3) on the W1/W2 specs can hide
    # exposed weight DMA; left at the default depth pending profiling.
    out2d = pl.pallas_call(
        functools.partial(mlp_kernel, eps=eps),
        out_shape=jax.ShapeDtypeStruct((M, C), out_dtype),
        grid_spec=pltpu.PrefetchScalarGridSpec(
            num_scalar_prefetch=0,
            grid=grid,
            in_specs=[
                pl.BlockSpec((tm_eff, C), lambda m, h: (m, 0)),   # x row tile (f32)
                pl.BlockSpec((C, th), lambda m, h: (0, h)),       # W1 hidden tile (bf16)
                pl.BlockSpec((1, th), lambda m, h: (0, h)),       # b1 hidden tile
                pl.BlockSpec((th, C), lambda m, h: (h, 0)),       # W2 hidden tile (bf16)
                pl.BlockSpec((1, C), lambda m, h: (0, 0)),        # b2
                pl.BlockSpec((1, C), lambda m, h: (0, 0)),        # gamma
                pl.BlockSpec((1, C), lambda m, h: (0, 0)),        # beta
            ],
            out_specs=pl.BlockSpec((tm_eff, C), lambda m, h: (m, 0)),
            scratch_shapes=scratch_shapes,
        ),
        compiler_params=pltpu.CompilerParams(
            dimension_semantics=("parallel", "arbitrary"),
            vmem_limit_bytes=vmem_limit,
        ),
        cost_estimate=cost,
    )(x2d, w1_bf, b1_2d, w2_bf, b2_2d, g_2d, beta_2d)

    return out2d.reshape(orig_shape)


def mlp_ref(x, w1, b1, w2, b2, gamma, beta, eps=1e-5):
    """Pure-JAX reference with the same bf16-operand / f32-accumulate precision policy."""
    C = x.shape[-1]
    x2d = x.reshape(-1, C)
    h = jnp.dot(x2d.astype(jnp.bfloat16), w1.astype(jnp.bfloat16),
                preferred_element_type=jnp.float32) + b1
    h = h / (1.0 + jnp.exp(-h))
    logits = jnp.dot(h.astype(jnp.bfloat16), w2.astype(jnp.bfloat16),
                     preferred_element_type=jnp.float32) + b2
    y = x2d + logits
    mean = jnp.mean(y, axis=-1, keepdims=True)
    yc = y - mean
    var = jnp.mean(yc * yc, axis=-1, keepdims=True)
    out = yc * jax.lax.rsqrt(var + eps) * gamma + beta
    return out.reshape(x.shape)


def init_params(key, latent_dim, hidden_dim):
    """Mimic nn.Linear default init (U(-1/sqrt(fan_in), 1/sqrt(fan_in))) + LayerNorm defaults."""
    k1, k2, k3, k4 = jax.random.split(key, 4)
    bound1 = 1.0 / math.sqrt(latent_dim)
    bound2 = 1.0 / math.sqrt(hidden_dim)
    w1 = jax.random.uniform(k1, (latent_dim, hidden_dim), jnp.float32, -bound1, bound1)
    b1 = jax.random.uniform(k2, (hidden_dim,), jnp.float32, -bound1, bound1)
    w2 = jax.random.uniform(k3, (hidden_dim, latent_dim), jnp.float32, -bound2, bound2)
    b2 = jax.random.uniform(k4, (latent_dim,), jnp.float32, -bound2, bound2)
    gamma = jnp.ones((latent_dim,), jnp.float32)
    beta = jnp.zeros((latent_dim,), jnp.float32)
    return w1, b1, w2, b2, gamma, beta


if __name__ == "__main__":
    key = jax.random.PRNGKey(0)
    kx, kp = jax.random.split(key)

    # Small demo shapes consistent with the module; latent_dim=128 keeps stores lane-dense.
    batch, seq, latent_dim, hidden_dim = 4, 8, 128, 256
    x = jax.random.normal(kx, (batch, seq, latent_dim), jnp.float32)
    params = init_params(kp, latent_dim, hidden_dim)

    out = mlp_forward(x, *params)
    out = jax.block_until_ready(out)

    ref = mlp_ref(x, *params)
    assert out.shape == x.shape
    assert jnp.allclose(out, ref, atol=2e-3, rtol=2e-3), float(jnp.max(jnp.abs(out - ref)))

    print("KERNEL_OK")
</pallas_src>

<mosaic_0001>
module attributes {stable_mosaic.version = 11 : i64} {
  func.func @mlp_kernel(%arg0: i32, %arg1: i32, %arg2: memref<16x128xf32, #tpu.memory_space<vmem>>, %arg3: memref<128x256xbf16, #tpu.memory_space<vmem>>, %arg4: memref<1x256xf32, #tpu.memory_space<vmem>>, %arg5: memref<256x128xbf16, #tpu.memory_space<vmem>>, %arg6: memref<1x128xf32, #tpu.memory_space<vmem>>, %arg7: memref<1x128xf32, #tpu.memory_space<vmem>>, %arg8: memref<1x128xf32, #tpu.memory_space<vmem>>, %arg9: memref<16x128xf32, #tpu.memory_space<vmem>>, %arg10: memref<16x128xbf16, #tpu.memory_space<vmem>>) attributes {dimension_semantics = [#tpu.dimension_semantics<parallel>, #tpu.dimension_semantics<arbitrary>], iteration_bounds = array<i64: 2, 1>, scalar_prefetch = 0 : i64, scratch_operands = 1 : i64, tpu.core_type = #tpu.core_type<tc>, window_params = [{transform_indices = @transform_0, window_bounds = array<i64: 16, 128>}, {transform_indices = @transform_1, window_bounds = array<i64: 128, 256>}, {transform_indices = @transform_2, window_bounds = array<i64: 1, 256>}, {transform_indices = @transform_3, window_bounds = array<i64: 256, 128>}, {pipeline_mode = #tpu.pipeline_mode<synchronous>, transform_indices = @transform_4, window_bounds = array<i64: 1, 128>}, {pipeline_mode = #tpu.pipeline_mode<synchronous>, transform_indices = @transform_5, window_bounds = array<i64: 1, 128>}, {pipeline_mode = #tpu.pipeline_mode<synchronous>, transform_indices = @transform_6, window_bounds = array<i64: 1, 128>}, {transform_indices = @transform_7, window_bounds = array<i64: 16, 128>}]} {
    %c0_i32 = arith.constant 0 : i32
    %0 = arith.cmpi eq, %arg1, %c0_i32 : i32
    %1 = arith.extui %0 : i1 to i32
    %c0_i32_0 = arith.constant 0 : i32
    %2 = arith.cmpi ne, %1, %c0_i32_0 : i32
    scf.if %2 {
      %c0_17 = arith.constant 0 : index
      %c0_18 = arith.constant 0 : index
      %25 = vector.load %arg2[%c0_17, %c0_18] : memref<16x128xf32, #tpu.memory_space<vmem>>, vector<16x128xf32>
      %26 = arith.truncf %25 : vector<16x128xf32> to vector<16x128xbf16>
      %c0_19 = arith.constant 0 : index
      %c0_20 = arith.constant 0 : index
      %27 = vector.load %arg10[%c0_19, %c0_20] : memref<16x128xbf16, #tpu.memory_space<vmem>>, vector<16x128xbf16>
      tpu.vector_store %arg10[%c0_19, %c0_20], %26 {strides = array<i32>} : memref<16x128xbf16, #tpu.memory_space<vmem>>, vector<16x128xbf16>,
      %cst_21 = arith.constant 0.000000e+00 : f32
      %28 = vector.broadcast %cst_21 : f32 to vector<16x128xf32>
      %c0_22 = arith.constant 0 : index
      %c0_23 = arith.constant 0 : index
      %29 = vector.load %arg9[%c0_22, %c0_23] : memref<16x128xf32, #tpu.memory_space<vmem>>, vector<16x128xf32>
      tpu.vector_store %arg9[%c0_22, %c0_23], %28 {strides = array<i32>} : memref<16x128xf32, #tpu.memory_space<vmem>>, vector<16x128xf32>,
    } else {
    }
    %c0 = arith.constant 0 : index
    %c0_1 = arith.constant 0 : index
    %3 = vector.load %arg10[%c0, %c0_1] : memref<16x128xbf16, #tpu.memory_space<vmem>>, vector<16x128xbf16>
    %c0_2 = arith.constant 0 : index
    %c0_3 = arith.constant 0 : index
    %4 = vector.load %arg3[%c0_2, %c0_3] : memref<128x256xbf16, #tpu.memory_space<vmem>>, vector<128x256xbf16>
    %cst = arith.constant dense<0.000000e+00> : vector<16x256xf32>
    %5 = tpu.matmul %3, %4, %cst {dimension_numbers = #tpu.dot_dimension_numbers<[1], [0], [0], [1], [0, 0, 1, 1], [], []>} : vector<16x128xbf16>, vector<128x256xbf16>, vector<16x256xf32> -> vector<16x256xf32>
    %c0_4 = arith.constant 0 : index
    %c0_5 = arith.constant 0 : index
    %6 = vector.load %arg4[%c0_4, %c0_5] : memref<1x256xf32, #tpu.memory_space<vmem>>, vector<1x256xf32>
    %7 = vector.broadcast %6 : vector<1x256xf32> to vector<16x256xf32>
    %8 = arith.addf %5, %7 : vector<16x256xf32>
    %cst_6 = arith.constant 0.000000e+00 : f32
    %9 = vector.broadcast %cst_6 : f32 to vector<16x256xf32>
    %10 = arith.subf %9, %8 : vector<16x256xf32>
    %11 = math.exp %10 : vector<16x256xf32>
    %cst_7 = arith.constant 1.000000e+00 : f32
    %12 = vector.broadcast %cst_7 : f32 to vector<16x256xf32>
    %13 = arith.addf %12, %11 : vector<16x256xf32>
    %14 = tpu.reciprocal %13 {approx = true} : vector<16x256xf32> -> vector<16x256xf32>
    %15 = arith.mulf %8, %14 : vector<16x256xf32>
    %c0_8 = arith.constant 0 : index
    %c0_9 = arith.constant 0 : index
    %16 = vector.load %arg9[%c0_8, %c0_9] : memref<16x128xf32, #tpu.memory_space<vmem>>, vector<16x128xf32>
    %17 = arith.truncf %15 : vector<16x256xf32> to vector<16x256xbf16>
    %c0_10 = arith.constant 0 : index
    %c0_11 = arith.constant 0 : index
    %18 = vector.load %arg5[%c0_10, %c0_11] : memref<256x128xbf16, #tpu.memory_space<vmem>>, vector<256x128xbf16>
    %cst_12 = arith.constant dense<0.000000e+00> : vector<16x128xf32>
    %19 = tpu.matmul %17, %18, %cst_12 {dimension_numbers = #tpu.dot_dimension_numbers<[1], [0], [0], [1], [0, 0, 1, 1], [], []>} : vector<16x256xbf16>, vector<256x128xbf16>, vector<16x128xf32> -> vector<16x128xf32>
    %20 = arith.addf %16, %19 : vector<16x128xf32>
    %c0_13 = arith.constant 0 : index
    %c0_14 = arith.constant 0 : index
    %21 = vector.load %arg9[%c0_13, %c0_14] : memref<16x128xf32, #tpu.memory_space<vmem>>, vector<16x128xf32>
    tpu.vector_store %arg9[%c0_13, %c0_14], %20 {strides = array<i32>} : memref<16x128xf32, #tpu.memory_space<vmem>>, vector<16x128xf32>,
    %c0_i32_15 = arith.constant 0 : i32
    %22 = arith.cmpi eq, %arg1, %c0_i32_15 : i32
    %23 = arith.extui %22 : i1 to i32
    %c0_i32_16 = arith.constant 0 : i32
    %24 = arith.cmpi ne, %23, %c0_i32_16 : i32
    scf.if %24 {
      %c0_17 = arith.constant 0 : index
      %c0_18 = arith.constant 0 : index
      %25 = vector.load %arg2[%c0_17, %c0_18] : memref<16x128xf32, #tpu.memory_space<vmem>>, vector<16x128xf32>
      %c0_19 = arith.constant 0 : index
      %c0_20 = arith.constant 0 : index
      %26 = vector.load %arg9[%c0_19, %c0_20] : memref<16x128xf32, #tpu.memory_space<vmem>>, vector<16x128xf32>
      %27 = arith.addf %25, %26 : vector<16x128xf32>
      %c0_21 = arith.constant 0 : index
      %c0_22 = arith.constant 0 : index
      %28 = vector.load %arg6[%c0_21, %c0_22] : memref<1x128xf32, #tpu.memory_space<vmem>>, vector<1x128xf32>
      %29 = vector.broadcast %28 : vector<1x128xf32> to vector<16x128xf32>
      %30 = arith.addf %27, %29 : vector<16x128xf32>
      %cst_23 = arith.constant dense<0.000000e+00> : vector<16xf32>
      %31 = vector.multi_reduction <add>, %30, %cst_23 [1] : vector<16x128xf32> to vector<16xf32>
      %32 = vector.shape_cast %31 : vector<16xf32> to vector<16x1xf32>
      %cst_24 = arith.constant 1.280000e+02 : f32
      %33 = vector.broadcast %cst_24 : f32 to vector<16x1xf32>
      %34 = arith.divf %32, %33 : vector<16x1xf32>
      %35 = vector.broadcast %34 : vector<16x1xf32> to vector<16x128xf32>
      %36 = arith.subf %30, %35 : vector<16x128xf32>
      %37 = arith.mulf %36, %36 : vector<16x128xf32>
      %cst_25 = arith.constant dense<0.000000e+00> : vector<16xf32>
      %38 = vector.multi_reduction <add>, %37, %cst_25 [1] : vector<16x128xf32> to vector<16xf32>
      %39 = vector.shape_cast %38 : vector<16xf32> to vector<16x1xf32>
      %cst_26 = arith.constant 1.280000e+02 : f32
      %40 = vector.broadcast %cst_26 : f32 to vector<16x1xf32>
      %41 = arith.divf %39, %40 : vector<16x1xf32>
      %cst_27 = arith.constant 9.99999974E-6 : f32
      %42 = vector.broadcast %cst_27 : f32 to vector<16x1xf32>
      %43 = arith.addf %41, %42 : vector<16x1xf32>
      %44 = math.rsqrt %43 : vector<16x1xf32>
      %45 = vector.broadcast %44 : vector<16x1xf32> to vector<16x128xf32>
      %46 = arith.mulf %36, %45 : vector<16x128xf32>
      %c0_28 = arith.constant 0 : index
      %c0_29 = arith.constant 0 : index
      %47 = vector.load %arg7[%c0_28, %c0_29] : memref<1x128xf32, #tpu.memory_space<vmem>>, vector<1x128xf32>
      %48 = vector.broadcast %47 : vector<1x128xf32> to vector<16x128xf32>
      %49 = arith.mulf %46, %48 : vector<16x128xf32>
      %c0_30 = arith.constant 0 : index
      %c0_31 = arith.constant 0 : index
      %50 = vector.load %arg8[%c0_30, %c0_31] : memref<1x128xf32, #tpu.memory_space<vmem>>, vector<1x128xf32>
      %51 = vector.broadcast %50 : vector<1x128xf32> to vector<16x128xf32>
      %52 = arith.addf %49, %51 : vector<16x128xf32>
      %c0_32 = arith.constant 0 : index
      %c0_33 = arith.constant 0 : index
      %53 = vector.load %arg9[%c0_32, %c0_33] : memref<16x128xf32, #tpu.memory_space<vmem>>, vector<16x128xf32>
      tpu.vector_store %arg9[%c0_32, %c0_33], %52 {strides = array<i32>} : memref<16x128xf32, #tpu.memory_space<vmem>>, vector<16x128xf32>,
    } else {
    }
    return
  }
  func.func @transform_0(%arg0: i32, %arg1: i32) -> (i32, i32) {
    %c0_i32 = arith.constant 0 : i32
    %c0_i32_0 = arith.constant 0 : i32
    return %arg0, %c0_i32 : i32, i32
  }
  func.func @transform_1(%arg0: i32, %arg1: i32) -> (i32, i32) {
    %c0_i32 = arith.constant 0 : i32
    %c0_i32_0 = arith.constant 0 : i32
    return %c0_i32, %arg1 : i32, i32
  }
  func.func @transform_2(%arg0: i32, %arg1: i32) -> (i32, i32) {
    %c0_i32 = arith.constant 0 : i32
    %c0_i32_0 = arith.constant 0 : i32
    return %c0_i32, %arg1 : i32, i32
  }
  func.func @transform_3(%arg0: i32, %arg1: i32) -> (i32, i32) {
    %c0_i32 = arith.constant 0 : i32
    %c0_i32_0 = arith.constant 0 : i32
    return %arg1, %c0_i32 : i32, i32
  }
  func.func @transform_4(%arg0: i32, %arg1: i32) -> (i32, i32) {
    %c0_i32 = arith.constant 0 : i32
    %c0_i32_0 = arith.constant 0 : i32
    %c0_i32_1 = arith.constant 0 : i32
    return %c0_i32, %c0_i32_0 : i32, i32
  }
  func.func @transform_5(%arg0: i32, %arg1: i32) -> (i32, i32) {
    %c0_i32 = arith.constant 0 : i32
    %c0_i32_0 = arith.constant 0 : i32
    %c0_i32_1 = arith.constant 0 : i32
    return %c0_i32, %c0_i32_0 : i32, i32
  }
  func.func @transform_6(%arg0: i32, %arg1: i32) -> (i32, i32) {
    %c0_i32 = arith.constant 0 : i32
    %c0_i32_0 = arith.constant 0 : i32
    %c0_i32_1 = arith.constant 0 : i32
    return %c0_i32, %c0_i32_0 : i32, i32
  }
  func.func @transform_7(%arg0: i32, %arg1: i32) -> (i32, i32) {
    %c0_i32 = arith.constant 0 : i32
    %c0_i32_0 = arith.constant 0 : i32
    return %arg0, %c0_i32 : i32, i32
  }
}

</mosaic_0001>

<llo_original>
// kernel: tpu_custom_call.1
$region0: #{tpu_custom_call.1}
  #allocation0 [shape = 'u32[]', space=smem, size = 0x4, offset = 0x4, fixed_abs, tag = 'smem constant byte address 0x4 - core index']
  #allocation1 [shape = 'u32[144,128]{1,0:T(1,128)}', space=vmem, size = 0x12000, scoped, tag = 'internal scratch']
  #allocation2 [shape = 'bf16[16,128]{1,0:T(16,128)(2,1)}', space=vmem, size = 0x1000, scoped, tag = 'scratch operand']
  %s0 = inlined_call_operand.hbm [shape: f32[32,128], index: 0, kind: input, shape index: {}]
  %s1 = inlined_call_operand.hbm [shape: bf16[128,256], index: 1, kind: input, shape index: {}]
  %s2 = inlined_call_operand.vmem [shape: f32[1,256], index: 2, kind: input, shape index: {}]
  %s3 = inlined_call_operand.hbm [shape: bf16[256,128], index: 3, kind: input, shape index: {}]
  %s4 = inlined_call_operand.vmem [shape: f32[1,128], index: 4, kind: input, shape index: {}]
  %s5 = inlined_call_operand.vmem [shape: f32[1,128], index: 5, kind: input, shape index: {}]
  %s6 = inlined_call_operand.vmem [shape: f32[1,128], index: 6, kind: input, shape index: {}]
  %s7 = inlined_call_operand.hbm [shape: f32[32,128], index: 7, kind: output, shape index: {}]
  %s8 = sld [smem:[#allocation0]]
  $region81: #{tpu_custom_call.1} parent=0
    _
  %s10 = ssub.s32 1, %s8
  %s11 = scalar_select 0, %s10, %s8
  $region1: #{tpu_custom_call.1} parent=0
    #allocation3 [shape = 'u8[16384]{0}', space=vmem, size = 0x4000, scoped, tag = 'input window, operand 0']
    #allocation4 [shape = 's32[2]{0}', space=sflag, size = 0x8, scoped, tag = 'scoped memory for tpu_custom_call.1']
    #allocation5 [shape = 's32[2]{0}', space=sflag, size = 0x8, scoped, tag = 'scoped memory for tpu_custom_call.1']
    #allocation6 [shape = 'u8[65536]{0}', space=vmem, size = 0x10000, scoped, tag = 'input window, operand 1, single buffered']
    #allocation7 [shape = 's32[1]{0}', space=sflag, size = 0x4, scoped, tag = 'scoped memory for tpu_custom_call.1']
    #allocation8 [shape = 'u8[65536]{0}', space=vmem, size = 0x10000, scoped, tag = 'input window, operand 3, single buffered']
    #allocation9 [shape = 'u8[16384]{0}', space=vmem, size = 0x4000, scoped, tag = 'output window, operand 0']
    %12 = vsyncpa [#allocation4], 0
    %s13 = scalar_lea.sflag [#allocation4], 1
    %14 = vsyncpa %s13, 0
    %15 = vsyncpa [#allocation7], 0
    %16 = vsyncpa [#allocation5], 0
    %s17 = scalar_lea.sflag [#allocation5], 1
    %18 = vsyncpa %s17, 0
    loop: start=0, step=1, limit=4
    $region2: #{tpu_custom_call.1} parent=1 // loop_pre_header
      _
    $region3: #{tpu_custom_call.1} parent=1 // loop_header
      %s20 = sphi 0, %s24
      %p21 = scmp.ge.s32.totalorder %s20, 4
      %s27 = sphi 0, %s39
      %s28 = sphi 0, %s35
      %s29 = sphi 0, %s27
      %s30 = sphi 0, %s28
      %s31 = sphi 0, %s29
      %s32 = sphi 0, %s30
      %s42 = sphi 0, %s44
      %s45 = sphi 0, %s42
      %s46 = sphi 0, %s45
      %s62 = sphi 0, %s46
      %s68 = sphi 0, %s70
      %s71 = sphi 0, %s68
      %s72 = sphi 0, %s71
      %s88 = sphi 0, %s72
      %s94 = sphi 0, %s96
      %s97 = sphi 0, %s94
      %s98 = sphi 0, %s97
      %s114 = sphi 0, %s98
      %s120 = sphi 0, %s122
      %s123 = sphi 0, %s120
      %s124 = sphi 0, %s123
      %s140 = sphi 0, %s124
      %s144 = sphi 0, %s144
      %s146 = sphi 0, %s144
      %s147 = sphi 0, %s146
      %s161 = sphi 0, %s147
      %s165 = sphi 0, %s165
      %s167 = sphi 0, %s165
      %s168 = sphi 0, %s167
      %s182 = sphi 0, %s168
      %s186 = sphi 0, %s186
      %s188 = sphi 0, %s186
      %s189 = sphi 0, %s188
      %s203 = sphi 0, %s189
      %s209 = sphi 0, %s211
      %s212 = sphi 0, %s209
      %s213 = sphi 0, %s212
      %s229 = sphi 0, %s213
    $region4: #{tpu_custom_call.1} parent=1 // loop_header_branch
      %23 = sbr.rel (%p21) target = $region8
    $region5: #{tpu_custom_call.1} parent=1 // loop_body
      %s25 = ssub.s32 %s20, 1
      %s26 = ssub.s32 %s20, 2
      %s33 = sadd.s32 1, %s28
      %p34 = scmp.ge.s32.totalorder %s33, 1
      %s35 = scalar_select %p34, 0, %s33
      %s36 = sadd.s32 1, %s27
      %s37 = scalar_select %p34, %s36, %s27
      %p38 = scmp.ge.s32.totalorder %s37, 2
      %s39 = scalar_select %p38, 0, %s37
      %s40 = ssub.s32 %s27, %s39
      %p41 = scmp.eq.s32.totalorder %s40, 0
      %s43 = sadd.s32 %s42, 1
      %s44 = scalar_select %p41, %s42, %s43
      %p47 = pneg %p41
      %p48 = scmp.eq.s32.totalorder %s20, 1
      %p49 = por %p47, %p48
      %p50 = scmp.ne.s32.totalorder %s42, %s45
      %p51 = scmp.eq.s32.totalorder %s20, 0
      %p52 = por %p50, %p51
      %p53 = scmp.ne.s32.totalorder %s42, %s45
      %p54 = scmp.eq.s32.totalorder %s25, 1
      %p55 = por %p53, %p54
      %p56 = scmp.ne.s32.totalorder %s45, %s46
      %p57 = scmp.eq.s32.totalorder %s25, 0
      %p58 = por %p56, %p57
      %p59 = scmp.ne.s32.totalorder %s45, %s46
      %p60 = scmp.eq.s32.totalorder %s26, 1
      %p61 = por %p59, %p60
      %p63 = scmp.ne.s32.totalorder %s46, %s62
      %p64 = scmp.eq.s32.totalorder %s26, 0
      %p65 = por %p63, %p64
      %s66 = ssub.s32 %s28, %s35
      %p67 = scmp.eq.s32.totalorder %s66, 0
      %s69 = sadd.s32 %s68, 1
      %s70 = scalar_select %p67, %s68, %s69
      %p73 = pneg %p67
      %p74 = scmp.eq.s32.totalorder %s20, 1
      %p75 = por %p73, %p74
      %p76 = scmp.ne.s32.totalorder %s68, %s71
      %p77 = scmp.eq.s32.totalorder %s20, 0
      %p78 = por %p76, %p77
      %p79 = scmp.ne.s32.totalorder %s68, %s71
      %p80 = scmp.eq.s32.totalorder %s25, 1
      %p81 = por %p79, %p80
      %p82 = scmp.ne.s32.totalorder %s71, %s72
      %p83 = scmp.eq.s32.totalorder %s25, 0
      %p84 = por %p82, %p83
      %p85 = scmp.ne.s32.totalorder %s71, %s72
      %p86 = scmp.eq.s32.totalorder %s26, 1
      %p87 = por %p85, %p86
      %p89 = scmp.ne.s32.totalorder %s72, %s88
      %p90 = scmp.eq.s32.totalorder %s26, 0
      %p91 = por %p89, %p90
      %s92 = ssub.s32 %s28, %s35
      %p93 = scmp.eq.s32.totalorder %s92, 0
      %s95 = sadd.s32 %s94, 1
      %s96 = scalar_select %p93, %s94, %s95
      %p99 = pneg %p93
      %p100 = scmp.eq.s32.totalorder %s20, 1
      %p101 = por %p99, %p100
      %p102 = scmp.ne.s32.totalorder %s94, %s97
      %p103 = scmp.eq.s32.totalorder %s20, 0
      %p104 = por %p102, %p103
      %p105 = scmp.ne.s32.totalorder %s94, %s97
      %p106 = scmp.eq.s32.totalorder %s25, 1
      %p107 = por %p105, %p106
      %p108 = scmp.ne.s32.totalorder %s97, %s98
      %p109 = scmp.eq.s32.totalorder %s25, 0
      %p110 = por %p108, %p109
      %p111 = scmp.ne.s32.totalorder %s97, %s98
      %p112 = scmp.eq.s32.totalorder %s26, 1
      %p113 = por %p111, %p112
      %p115 = scmp.ne.s32.totalorder %s98, %s114
      %p116 = scmp.eq.s32.totalorder %s26, 0
      %p117 = por %p115, %p116
      %s118 = ssub.s32 %s28, %s35
      %p119 = scmp.eq.s32.totalorder %s118, 0
      %s121 = sadd.s32 %s120, 1
      %s122 = scalar_select %p119, %s120, %s121
      %p125 = pneg %p119
      %p126 = scmp.eq.s32.totalorder %s20, 1
      %p127 = por %p125, %p126
      %p128 = scmp.ne.s32.totalorder %s120, %s123
      %p129 = scmp.eq.s32.totalorder %s20, 0
      %p130 = por %p128, %p129
      %p131 = scmp.ne.s32.totalorder %s120, %s123
      %p132 = scmp.eq.s32.totalorder %s25, 1
      %p133 = por %p131, %p132
      %p134 = scmp.ne.s32.totalorder %s123, %s124
      %p135 = scmp.eq.s32.totalorder %s25, 0
      %p136 = por %p134, %p135
      %p137 = scmp.ne.s32.totalorder %s123, %s124
      %p138 = scmp.eq.s32.totalorder %s26, 1
      %p139 = por %p137, %p138
      %p141 = scmp.ne.s32.totalorder %s124, %s140
      %p142 = scmp.eq.s32.totalorder %s26, 0
      %p143 = por %p141, %p142
      %s145 = sadd.s32 %s144, 1
      %p148 = scmp.eq.s32.totalorder %s20, 1
      %p149 = scmp.ne.s32.totalorder %s144, %s146
      %p150 = scmp.eq.s32.totalorder %s20, 0
      %p151 = por %p149, %p150
      %p152 = scmp.ne.s32.totalorder %s144, %s146
      %p153 = scmp.eq.s32.totalorder %s25, 1
      %p154 = por %p152, %p153
      %p155 = scmp.ne.s32.totalorder %s146, %s147
      %p156 = scmp.eq.s32.totalorder %s25, 0
      %p157 = por %p155, %p156
      %p158 = scmp.ne.s32.totalorder %s146, %s147
      %p159 = scmp.eq.s32.totalorder %s26, 1
      %p160 = por %p158, %p159
      %p162 = scmp.ne.s32.totalorder %s147, %s161
      %p163 = scmp.eq.s32.totalorder %s26, 0
      %p164 = por %p162, %p163
      %s166 = sadd.s32 %s165, 1
      %p169 = scmp.eq.s32.totalorder %s20, 1
      %p170 = scmp.ne.s32.totalorder %s165, %s167
      %p171 = scmp.eq.s32.totalorder %s20, 0
      %p172 = por %p170, %p171
      %p173 = scmp.ne.s32.totalorder %s165, %s167
      %p174 = scmp.eq.s32.totalorder %s25, 1
      %p175 = por %p173, %p174
      %p176 = scmp.ne.s32.totalorder %s167, %s168
      %p177 = scmp.eq.s32.totalorder %s25, 0
      %p178 = por %p176, %p177
      %p179 = scmp.ne.s32.totalorder %s167, %s168
      %p180 = scmp.eq.s32.totalorder %s26, 1
      %p181 = por %p179, %p180
      %p183 = scmp.ne.s32.totalorder %s168, %s182
      %p184 = scmp.eq.s32.totalorder %s26, 0
      %p185 = por %p183, %p184
      %s187 = sadd.s32 %s186, 1
      %p190 = scmp.eq.s32.totalorder %s20, 1
      %p191 = scmp.ne.s32.totalorder %s186, %s188
      %p192 = scmp.eq.s32.totalorder %s20, 0
      %p193 = por %p191, %p192
      %p194 = scmp.ne.s32.totalorder %s186, %s188
      %p195 = scmp.eq.s32.totalorder %s25, 1
      %p196 = por %p194, %p195
      %p197 = scmp.ne.s32.totalorder %s188, %s189
      %p198 = scmp.eq.s32.totalorder %s25, 0
      %p199 = por %p197, %p198
      %p200 = scmp.ne.s32.totalorder %s188, %s189
      %p201 = scmp.eq.s32.totalorder %s26, 1
      %p202 = por %p200, %p201
      %p204 = scmp.ne.s32.totalorder %s189, %s203
      %p205 = scmp.eq.s32.totalorder %s26, 0
      %p206 = por %p204, %p205
      %s207 = ssub.s32 %s27, %s39
      %p208 = scmp.eq.s32.totalorder %s207, 0
      %s210 = sadd.s32 %s209, 1
      %s211 = scalar_select %p208, %s209, %s210
      %p214 = pneg %p208
      %p215 = scmp.eq.s32.totalorder %s20, 1
      %p216 = por %p214, %p215
      %p217 = scmp.ne.s32.totalorder %s209, %s212
      %p218 = scmp.eq.s32.totalorder %s20, 0
      %p219 = por %p217, %p218
      %p220 = scmp.ne.s32.totalorder %s209, %s212
      %p221 = scmp.eq.s32.totalorder %s25, 1
      %p222 = por %p220, %p221
      %p223 = scmp.ne.s32.totalorder %s212, %s213
      %p224 = scmp.eq.s32.totalorder %s25, 0
      %p225 = por %p223, %p224
      %p226 = scmp.ne.s32.totalorder %s212, %s213
      %p227 = scmp.eq.s32.totalorder %s26, 1
      %p228 = por %p226, %p227
      %p230 = scmp.ne.s32.totalorder %s213, %s229
      %p231 = scmp.eq.s32.totalorder %s26, 0
      %p232 = por %p230, %p231
      %p233 = scmp.le.s32.totalorder 1, %s20
      %p234 = scmp.lt.s32.totalorder %s20, 3
      %p235 = pnand %p233, %p234
      %p236 = pneg %p235
      // Predicated region
      $region9: #{tpu_custom_call.1} parent=5 // pred_check
        _
      $region10: #{tpu_custom_call.1} parent=5 // pred_check_branch
        %238 = sbr.rel (%p235) target = $region12
      $region11: #{tpu_custom_call.1} parent=5 // pred_region
        %s239 = ssub.s32 %s20, 1
        // Predicated region
        $region13: #{tpu_custom_call.1} parent=11 // pred_check
          %p240 = pneg %p84
        $region14: #{tpu_custom_call.1} parent=11 // pred_check_branch
          %242 = sbr.rel (%p240) target = $region16
        $region15: #{tpu_custom_call.1} parent=11 // pred_region
          %s243 = smul.u32 2, %s30
          %s245 = ssub.s32 2048, 2048
          %246 = vsyncadd [#allocation7], %s245
          %s247 = smul.addr %s243, 64
          %s248 = scalar_lea.hbm %s1, %s247
          %s249 = sshll.u32 [#allocation6], 4
          %s250 = int_to_ptr.vmem [resolvable:$true] %s249
          %255 = dma.hbm_to_vmem [thread:$0]  %s248, 2048, %s250, [#allocation7], 128, 128, 8
        $region16: #{tpu_custom_call.1} parent=11 // pred_fallthru
          _
        // Predicated region
        $region17: #{tpu_custom_call.1} parent=11 // pred_check
          %p256 = pneg %p110
        $region18: #{tpu_custom_call.1} parent=11 // pred_check_branch
          %258 = sbr.rel (%p256) target = $region20
        $region19: #{tpu_custom_call.1} parent=11 // pred_region
          %s259 = smul.u32 2, %s30
          %p260 = scmp.lt.s32.totalorder %s259, 1
          %s261 = scalar_select %p260, %s259, 1
          %s262 = scalar_lea.vmem %s2, %s261
          %s263 = smul.u32 2, %s30
        $region20: #{tpu_custom_call.1} parent=11 // pred_fallthru
          _
        // Predicated region
        $region21: #{tpu_custom_call.1} parent=11 // pred_check
          %p264 = pneg %p136
        $region22: #{tpu_custom_call.1} parent=11 // pred_check_branch
          %266 = sbr.rel (%p264) target = $region24
        $region23: #{tpu_custom_call.1} parent=11 // pred_region
          %s267 = smul.u32 32, %s30
          %s269 = ssub.s32 2048, 2048
          %270 = vsyncadd [#allocation7], %s269
          %s271 = smul.addr %s267, 64
          %s272 = scalar_lea.hbm %s3, %s271
          %s273 = sshll.u32 [#allocation8], 4
          %s274 = int_to_ptr.vmem [resolvable:$true] %s273
          %279 = dma.hbm_to_vmem [thread:$0]  %s272, 2048, %s274, [#allocation7], 64, 64, 4
        $region24: #{tpu_custom_call.1} parent=11 // pred_fallthru
          _
        // Predicated region
        $region25: #{tpu_custom_call.1} parent=11 // pred_check
          %p280 = pneg %p157
        $region26: #{tpu_custom_call.1} parent=11 // pred_check_branch
          %282 = sbr.rel (%p280) target = $region28
        $region27: #{tpu_custom_call.1} parent=11 // pred_region
          _
        $region28: #{tpu_custom_call.1} parent=11 // pred_fallthru
          _
        // Predicated region
        $region29: #{tpu_custom_call.1} parent=11 // pred_check
          %p283 = pneg %p178
        $region30: #{tpu_custom_call.1} parent=11 // pred_check_branch
          %285 = sbr.rel (%p283) target = $region32
        $region31: #{tpu_custom_call.1} parent=11 // pred_region
          _
        $region32: #{tpu_custom_call.1} parent=11 // pred_fallthru
          _
        // Predicated region
        $region33: #{tpu_custom_call.1} parent=11 // pred_check
          %p286 = pneg %p199
        $region34: #{tpu_custom_call.1} parent=11 // pred_check_branch
          %288 = sbr.rel (%p286) target = $region36
        $region35: #{tpu_custom_call.1} parent=11 // pred_region
          _
        $region36: #{tpu_custom_call.1} parent=11 // pred_fallthru
          _
      $region12: #{tpu_custom_call.1} parent=5 // pred_fallthru
        _
      %p289 = scmp.lt.s32.totalorder %s20, 2
      // Predicated region
      $region37: #{tpu_custom_call.1} parent=5 // pred_check
        %p290 = pneg %p289
      $region38: #{tpu_custom_call.1} parent=5 // pred_check_branch
        %292 = sbr.rel (%p290) target = $region40
      $region39: #{tpu_custom_call.1} parent=5 // pred_region
        // Predicated region
        $region41: #{tpu_custom_call.1} parent=39 // pred_check
          %p293 = pneg %p52
        $region42: #{tpu_custom_call.1} parent=39 // pred_check_branch
          %295 = sbr.rel (%p293) target = $region44
        $region43: #{tpu_custom_call.1} parent=39 // pred_region
          %s296 = sand.u32 %s42, 1
          %s297 = scalar_lea.sflag [#allocation4], %s296
          %s298 = sand.u32 %s42, 1
          %s299 = smul.addr %s298, 16
          %s300 = scalar_lea.vmem [#allocation3], %s299
          %s301 = smul.u32 2, %s27
          %s303 = ssub.s32 256, 256
          %304 = vsyncadd %s297, %s303
          %s305 = smul.addr %s301, 128
          %s306 = scalar_lea.hbm %s0, %s305
          %s307 = sshll.u32 %s300, 4
          %s308 = int_to_ptr.vmem [resolvable:$true] %s307
          %313 = dma.hbm_to_vmem [thread:$0]  %s306, 256, %s308, %s297, 128, 128, 8
        $region44: #{tpu_custom_call.1} parent=39 // pred_fallthru
          _
      $region40: #{tpu_custom_call.1} parent=5 // pred_fallthru
        _
      %p314 = scmp.le.s32.totalorder 1, %s20
      %p315 = scmp.lt.s32.totalorder %s20, 3
      %p316 = pnand %p314, %p315
      %p317 = pneg %p316
      // Predicated region
      $region45: #{tpu_custom_call.1} parent=5 // pred_check
        _
      $region46: #{tpu_custom_call.1} parent=5 // pred_check_branch
        %319 = sbr.rel (%p316) target = $region48
      $region47: #{tpu_custom_call.1} parent=5 // pred_region
        %s320 = ssub.s32 %s20, 1
        %s321 = sand.u32 %s45, 1
        %s322 = scalar_lea.sflag [#allocation4], %s321
        %s323 = sand.u32 %s45, 1
        %s324 = smul.addr %s323, 16
        %s325 = scalar_lea.vmem [#allocation3], %s324
        // Predicated region
        $region49: #{tpu_custom_call.1} parent=47 // pred_check
          %p326 = pneg %p58
        $region50: #{tpu_custom_call.1} parent=47 // pred_check_branch
          %328 = sbr.rel (%p326) target = $region52
        $region51: #{tpu_custom_call.1} parent=47 // pred_region
          %329 = dma.done %s322, 256
        $region52: #{tpu_custom_call.1} parent=47 // pred_fallthru
          _
        // Predicated region
        $region53: #{tpu_custom_call.1} parent=47 // pred_check
          %p330 = pneg %p84
        $region54: #{tpu_custom_call.1} parent=47 // pred_check_branch
          %332 = sbr.rel (%p330) target = $region56
        $region55: #{tpu_custom_call.1} parent=47 // pred_region
          %333 = dma.done [#allocation7], 2048
        $region56: #{tpu_custom_call.1} parent=47 // pred_fallthru
          _
        // Predicated region
        $region57: #{tpu_custom_call.1} parent=47 // pred_check
          %p334 = pneg %p136
        $region58: #{tpu_custom_call.1} parent=47 // pred_check_branch
          %336 = sbr.rel (%p334) target = $region60
        $region59: #{tpu_custom_call.1} parent=47 // pred_region
          %337 = dma.done [#allocation7], 2048
        $region60: #{tpu_custom_call.1} parent=47 // pred_fallthru
          _
        %s338 = sand.u32 %s45, 1
        %s339 = scalar_lea.sflag [#allocation4], %s338
        %s340 = sand.u32 %s45, 1
        %s341 = smul.addr %s340, 16
        %s342 = scalar_lea.vmem [#allocation3], %s341
        %p343 = pneg %p58
        %p344 = pneg %p55
        %p345 = pneg %p84
        %p346 = pneg %p81
        %s347 = smul.u32 2, %s30
        %p348 = scmp.lt.s32.totalorder %s347, 1
        %s349 = scalar_select %p348, %s347, 1
        %s350 = scalar_lea.vmem %s2, %s349
        %p351 = pneg %p110
        %p352 = pneg %p107
        %p353 = pneg %p136
        %p354 = pneg %p133
        %p355 = pneg %p157
        %p356 = pneg %p154
        %p357 = pneg %p178
        %p358 = pneg %p175
        %p359 = pneg %p199
        %p360 = pneg %p196
        %p361 = pneg %p225
        %p362 = pneg %p222
        %s363 = sand.u32 %s212, 1
        %s364 = scalar_lea.sflag [#allocation5], %s363
        %s365 = sand.u32 %s212, 1
        %s366 = smul.addr %s365, 16
        %s367 = scalar_lea.vmem [#allocation9], %s366
        %s368 = smul.u32 2, %s29
        %s369 = smul.u32 2, %s30
        %s370 = smul.u32 2, %s30
        %p371 = scmp.lt.s32.totalorder %s370, 1
        %s372 = scalar_select %p371, %s370, 1
        %s373 = scalar_lea.vmem %s2, %s372
        %s374 = smul.u32 2, %s30
        %s375 = smul.u32 32, %s30
        %s376 = smul.u32 2, %s29
        %p378 = scmp.eq.s32.totalorder %s30, 0
        // Predicated region
        $region61: #{tpu_custom_call.1} parent=47 // pred_check
          %p379 = pneg %p378
        $region62: #{tpu_custom_call.1} parent=47 // pred_check_branch
          %381 = sbr.rel (%p379) target = $region64
        $region63: #{tpu_custom_call.1} parent=47 // pred_region
          %v382 = vld [vmem:[%s325] sm:$0xff]
          %v383 = vld [vmem:[%s325 + $0x8] sm:$0xff]
          %v384 = vpack.c.bf16 %v383, %v382
          %385 = vst [vmem:[#allocation2] sm:$0xff] %v384
          %386 = vst [vmem:[%s367] sm:$0xff] 0.0
          %387 = vst [vmem:[%s367 + $0x8] sm:$0xff] 0.0
        $region64: #{tpu_custom_call.1} parent=47 // pred_fallthru
          _
        %v388 = vld [vmem:[#allocation2] sm:$0xff]
        %v389 = vld [vmem:[#allocation6] sm:$0xff]
        %v390 = vld [vmem:[#allocation6 + $0x8] sm:$0xff]
        %v391 = vld [vmem:[#allocation6 + $0x10] sm:$0xff]
        %v392 = vld [vmem:[#allocation6 + $0x18] sm:$0xff]
        %v393 = vld [vmem:[#allocation6 + $0x20] sm:$0xff]
        %v394 = vld [vmem:[#allocation6 + $0x28] sm:$0xff]
        %v395 = vld [vmem:[#allocation6 + $0x30] sm:$0xff]
        %v396 = vld [vmem:[#allocation6 + $0x38] sm:$0xff]
        %v397 = vld [vmem:[#allocation6 + $0x40] sm:$0xff]
        %v398 = vld [vmem:[#allocation6 + $0x48] sm:$0xff]
        %v399 = vld [vmem:[#allocation6 + $0x50] sm:$0xff]
        %v400 = vld [vmem:[#allocation6 + $0x58] sm:$0xff]
        %v401 = vld [vmem:[#allocation6 + $0x60] sm:$0xff]
        %v402 = vld [vmem:[#allocation6 + $0x68] sm:$0xff]
        %v403 = vld [vmem:[#allocation6 + $0x70] sm:$0xff]
        %v404 = vld [vmem:[#allocation6 + $0x78] sm:$0xff]
        %v405 = vld [vmem:[%s373] sm:$0x3]
        %v407 = vlaneseq
        %v408 = vshrl.u32 %v407, 7
        %v409 = vsub.s32 0, %v408
        %v410 = vrot.slane %v405, %v409
        %v411 = vlaneseq
        %v412 = vshrl.u32 %v411, 7
        %v413 = vsub.s32 1, %v412
        %v414 = vrot.slane %v405, %v413
        %v433 = vunpack.c.l.b16 %v389
        %v434 = vunpack.c.h.b16 %v389
        %v435 = vunpack.c.l.b16 %v390
        %v436 = vunpack.c.h.b16 %v390
        %v437 = vunpack.c.l.b16 %v391
        %v438 = vunpack.c.h.b16 %v391
        %v439 = vunpack.c.l.b16 %v392
        %v440 = vunpack.c.h.b16 %v392
        %v441 = vunpack.c.l.b16 %v393
        %v442 = vunpack.c.h.b16 %v393
        %v443 = vunpack.c.l.b16 %v394
        %v444 = vunpack.c.h.b16 %v394
        %v445 = vunpack.c.l.b16 %v395
        %v446 = vunpack.c.h.b16 %v395
        %v447 = vunpack.c.l.b16 %v396
        %v448 = vunpack.c.h.b16 %v396
        %v449 = vunpack.c.l.b16 %v397
        %v450 = vunpack.c.h.b16 %v397
        %v451 = vunpack.c.l.b16 %v398
        %v452 = vunpack.c.h.b16 %v398
        %v453 = vunpack.c.l.b16 %v399
        %v454 = vunpack.c.h.b16 %v399
        %v455 = vunpack.c.l.b16 %v400
        %v456 = vunpack.c.h.b16 %v400
        %v457 = vunpack.c.l.b16 %v401
        %v458 = vunpack.c.h.b16 %v401
        %v459 = vunpack.c.l.b16 %v402
        %v460 = vunpack.c.h.b16 %v402
        %v461 = vunpack.c.l.b16 %v403
        %v462 = vunpack.c.h.b16 %v403
        %v463 = vunpack.c.l.b16 %v404
        %v464 = vunpack.c.h.b16 %v404
        %v465 = vpack.c.b16 %v435, %v433
        %v466 = vpack.c.b16 %v436, %v434
        %v467 = vpack.c.b16 %v439, %v437
        %v468 = vpack.c.b16 %v440, %v438
        %v469 = vpack.c.b16 %v443, %v441
        %v470 = vpack.c.b16 %v444, %v442
        %v471 = vpack.c.b16 %v447, %v445
        %v472 = vpack.c.b16 %v448, %v446
        %v473 = vpack.c.b16 %v451, %v449
        %v474 = vpack.c.b16 %v452, %v450
        %v475 = vpack.c.b16 %v455, %v453
        %v476 = vpack.c.b16 %v456, %v454
        %v477 = vpack.c.b16 %v459, %v457
        %v478 = vpack.c.b16 %v460, %v458
        %v479 = vpack.c.b16 %v463, %v461
        %v480 = vpack.c.b16 %v464, %v462
        %497 = vmatprep.subr.bf16.mxu0 %v466
        %498 = vmatpush1.bf16.msra.mxu0 %v465
        %499 = vmatprep.subr.bf16.mxu0 %v468
        %500 = vmatpush1.bf16.msra.mxu0 %v467
        %501 = vmatprep.subr.bf16.mxu0 %v470
        %502 = vmatpush1.bf16.msra.mxu0 %v469
        %503 = vmatprep.subr.bf16.mxu0 %v472
        %504 = vmatpush1.bf16.msra.mxu0 %v471
        %505 = vmatprep.subr.bf16.mxu0 %v474
        %506 = vmatpush1.bf16.msra.mxu0 %v473
        %507 = vmatprep.subr.bf16.mxu0 %v476
        %508 = vmatpush1.bf16.msra.mxu0 %v475
        %509 = vmatprep.subr.bf16.mxu0 %v478
        %510 = vmatpush1.bf16.msra.mxu0 %v477
        %511 = vmatprep.subr.bf16.mxu0 %v480
        %512 = vmatpush1.bf16.msra.mxu0 %v479
        %513 = vmatprep.subr.bf16.mxu0 0
        %514 = vmatpush1.bf16.msra.mxu0 0
        %515 = vmatprep.subr.bf16.mxu0 0
        %516 = vmatpush1.bf16.msra.mxu0 0
        %517 = vmatprep.subr.bf16.mxu0 0
        %518 = vmatpush1.bf16.msra.mxu0 0
        %519 = vmatprep.subr.bf16.mxu0 0
        %520 = vmatpush1.bf16.msra.mxu0 0
        %521 = vmatprep.subr.bf16.mxu0 0
        %522 = vmatpush1.bf16.msra.mxu0 0
        %523 = vmatprep.subr.bf16.mxu0 0
        %524 = vmatpush1.bf16.msra.mxu0 0
        %525 = vmatprep.subr.bf16.mxu0 0
        %526 = vmatpush1.bf16.msra.mxu0 0
        %527 = vmatprep.subr.bf16.mxu0 0
        %528 = vmatpush1.bf16.msra.mxu0 0
        %529 = vmatprep.mubr.bf16.mxu0 0
        %530 = vmatmul.mubr.bf16.gmra.mrb[0].mxu0 %v388
        %v531 = vpop.f32.mrb[0].mxu0
        %v532 = vadd.f32 %v410, %v531
        %v533 = vpop.f32.mrb[0].mxu0
        %v534 = vadd.f32 %v414, %v533
        %v535 = vpop.f32.mrb[0].mxu0
        %v536 = vadd.f32 %v410, %v535
        %v537 = vpop.f32.mrb[0].mxu0
        %v538 = vadd.f32 %v414, %v537
        %539 = vdwg.mxu0
        %v540 = vsub.f32 0.0, %v532
        %v541 = vsub.f32 0.0, %v534
        %v542 = vsub.f32 0.0, %v536
        %v543 = vsub.f32 0.0, %v538
        %v544 = vmul.f32 %v540, 1.442695
        %v545 = vpow.pop %v544
        %v546 = vmul.f32 %v541, 1.442695
        %v547 = vpow.pop %v546
        %v548 = vmul.f32 %v542, 1.442695
        %v549 = vpow.pop %v548
        %v550 = vmul.f32 %v543, 1.442695
        %v551 = vpow.pop %v550
        %v552 = vadd.f32 %v545, 1.0
        %v553 = vadd.f32 %v547, 1.0
        %v554 = vadd.f32 %v549, 1.0
        %v555 = vadd.f32 %v551, 1.0
        %v556 = vrcp.pop %v552
        %v557 = vrcp.pop %v553
        %v558 = vrcp.pop %v554
        %v559 = vrcp.pop %v555
        %v560 = vmul.f32 %v532, %v556
        %v561 = vmul.f32 %v534, %v557
        %v562 = vmul.f32 %v536, %v558
        %v563 = vmul.f32 %v538, %v559
        %v564 = vld [vmem:[%s367] sm:$0xff]
        %v565 = vld [vmem:[%s367 + $0x8] sm:$0xff]
        %v566 = vpack.c.bf16 %v562, %v560
        %v567 = vpack.c.bf16 %v563, %v561
        %v568 = vld [vmem:[#allocation8] sm:$0xf]
        %v569 = vld [vmem:[#allocation8 + $0x4] sm:$0xf]
        %v570 = vld [vmem:[#allocation8 + $0x8] sm:$0xf]
        %v571 = vld [vmem:[#allocation8 + $0xc] sm:$0xf]
        %v572 = vld [vmem:[#allocation8 + $0x10] sm:$0xf]
        %v573 = vld [vmem:[#allocation8 + $0x14] sm:$0xf]
        %v574 = vld [vmem:[#allocation8 + $0x18] sm:$0xf]
        %v575 = vld [vmem:[#allocation8 + $0x1c] sm:$0xf]
        %v576 = vld [vmem:[#allocation8 + $0x20] sm:$0xf]
        %v577 = vld [vmem:[#allocation8 + $0x24] sm:$0xf]
        %v578 = vld [vmem:[#allocation8 + $0x28] sm:$0xf]
        %v579 = vld [vmem:[#allocation8 + $0x2c] sm:$0xf]
        %v580 = vld [vmem:[#allocation8 + $0x30] sm:$0xf]
        %v581 = vld [vmem:[#allocation8 + $0x34] sm:$0xf]
        %v582 = vld [vmem:[#allocation8 + $0x38] sm:$0xf]
        %v583 = vld [vmem:[#allocation8 + $0x3c] sm:$0xf]
        %v584 = vld [vmem:[#allocation8 + $0x40] sm:$0xf]
        %v585 = vld [vmem:[#allocation8 + $0x44] sm:$0xf]
        %v586 = vld [vmem:[#allocation8 + $0x48] sm:$0xf]
        %v587 = vld [vmem:[#allocation8 + $0x4c] sm:$0xf]
        %v588 = vld [vmem:[#allocation8 + $0x50] sm:$0xf]
        %v589 = vld [vmem:[#allocation8 + $0x54] sm:$0xf]
        %v590 = vld [vmem:[#allocation8 + $0x58] sm:$0xf]
        %v591 = vld [vmem:[#allocation8 + $0x5c] sm:$0xf]
        %v592 = vld [vmem:[#allocation8 + $0x60] sm:$0xf]
        %v593 = vld [vmem:[#allocation8 + $0x64] sm:$0xf]
        %v594 = vld [vmem:[#allocation8 + $0x68] sm:$0xf]
        %v595 = vld [vmem:[#allocation8 + $0x6c] sm:$0xf]
        %v596 = vld [vmem:[#allocation8 + $0x70] sm:$0xf]
        %v597 = vld [vmem:[#allocation8 + $0x74] sm:$0xf]
        %v598 = vld [vmem:[#allocation8 + $0x78] sm:$0xf]
        %v599 = vld [vmem:[#allocation8 + $0x7c] sm:$0xf]
        %v632 = vunpack.c.l.b16 %v568
        %v633 = vunpack.c.l.b16 %v569
        %v634 = vunpack.c.l.b16 %v570
        %v635 = vunpack.c.l.b16 %v571
        %v636 = vunpack.c.l.b16 %v572
        %v637 = vunpack.c.l.b16 %v573
        %v638 = vunpack.c.l.b16 %v574
        %v639 = vunpack.c.l.b16 %v575
        %v640 = vunpack.c.l.b16 %v576
        %v641 = vunpack.c.l.b16 %v577
        %v642 = vunpack.c.l.b16 %v578
        %v643 = vunpack.c.l.b16 %v579
        %v644 = vunpack.c.l.b16 %v580
        %v645 = vunpack.c.l.b16 %v581
        %v646 = vunpack.c.l.b16 %v582
        %v647 = vunpack.c.l.b16 %v583
        %v648 = vunpack.c.l.b16 %v584
        %v649 = vunpack.c.l.b16 %v585
        %v650 = vunpack.c.l.b16 %v586
        %v651 = vunpack.c.l.b16 %v587
        %v652 = vunpack.c.l.b16 %v588
        %v653 = vunpack.c.l.b16 %v589
        %v654 = vunpack.c.l.b16 %v590
        %v655 = vunpack.c.l.b16 %v591
        %v656 = vunpack.c.l.b16 %v592
        %v657 = vunpack.c.l.b16 %v593
        %v658 = vunpack.c.l.b16 %v594
        %v659 = vunpack.c.l.b16 %v595
        %v660 = vunpack.c.l.b16 %v596
        %v661 = vunpack.c.l.b16 %v597
        %v662 = vunpack.c.l.b16 %v598
        %v663 = vunpack.c.l.b16 %v599
        %v664 = vpack.c.b16 %v633, %v632
        %v665 = vpack.c.b16 %v635, %v634
        %v666 = vpack.c.b16 %v637, %v636
        %v667 = vpack.c.b16 %v639, %v638
        %v668 = vpack.c.b16 %v641, %v640
        %v669 = vpack.c.b16 %v643, %v642
        %v670 = vpack.c.b16 %v645, %v644
        %v671 = vpack.c.b16 %v647, %v646
        %v672 = vpack.c.b16 %v649, %v648
        %v673 = vpack.c.b16 %v651, %v650
        %v674 = vpack.c.b16 %v653, %v652
        %v675 = vpack.c.b16 %v655, %v654
        %v676 = vpack.c.b16 %v657, %v656
        %v677 = vpack.c.b16 %v659, %v658
        %v678 = vpack.c.b16 %v661, %v660
        %v679 = vpack.c.b16 %v663, %v662
        %696 = vmatprep.subr.bf16.mxu0 0
        %697 = vmatpush1.bf16.msra.mxu0 %v664
        %698 = vmatprep.subr.bf16.mxu0 0
        %699 = vmatpush1.bf16.msra.mxu0 %v665
        %700 = vmatprep.subr.bf16.mxu0 0
        %701 = vmatpush1.bf16.msra.mxu0 %v666
        %702 = vmatprep.subr.bf16.mxu0 0
        %703 = vmatpush1.bf16.msra.mxu0 %v667
        %704 = vmatprep.subr.bf16.mxu0 0
        %705 = vmatpush1.bf16.msra.mxu0 %v668
        %706 = vmatprep.subr.bf16.mxu0 0
        %707 = vmatpush1.bf16.msra.mxu0 %v669
        %708 = vmatprep.subr.bf16.mxu0 0
        %709 = vmatpush1.bf16.msra.mxu0 %v670
        %710 = vmatprep.subr.bf16.mxu0 0
        %711 = vmatpush1.bf16.msra.mxu0 %v671
        %712 = vmatprep.subr.bf16.mxu0 0
        %713 = vmatpush1.bf16.msra.mxu0 %v672
        %714 = vmatprep.subr.bf16.mxu0 0
        %715 = vmatpush1.bf16.msra.mxu0 %v673
        %716 = vmatprep.subr.bf16.mxu0 0
        %717 = vmatpush1.bf16.msra.mxu0 %v674
        %718 = vmatprep.subr.bf16.mxu0 0
        %719 = vmatpush1.bf16.msra.mxu0 %v675
        %720 = vmatprep.subr.bf16.mxu0 0
        %721 = vmatpush1.bf16.msra.mxu0 %v676
        %722 = vmatprep.subr.bf16.mxu0 0
        %723 = vmatpush1.bf16.msra.mxu0 %v677
        %724 = vmatprep.subr.bf16.mxu0 0
        %725 = vmatpush1.bf16.msra.mxu0 %v678
        %726 = vmatprep.subr.bf16.mxu0 0
        %727 = vmatpush1.bf16.msra.mxu0 %v679
        %728 = vmatprep.mubr.bf16.mxu0 %v567
        %729 = vmatmul.mubr.bf16.gmra.mrb[0].mxu0 %v566
        %v730 = vpop.f32.mrb[0].mxu0
        %v731 = vadd.f32 0.0, %v730
        %v732 = vpop.f32.mrb[0].mxu0
        %v733 = vpop.f32.mrb[0].mxu0
        %v734 = vadd.f32 0.0, %v733
        %v735 = vpop.f32.mrb[0].mxu0
        %736 = vdwg.mxu0
        %v737 = vadd.f32 %v564, %v731
        %v738 = vadd.f32 %v565, %v734
        %739 = vst [vmem:[%s367] sm:$0xff] %v737
        %740 = vst [vmem:[%s367 + $0x8] sm:$0xff] %v738
        // Predicated region
        $region65: #{tpu_custom_call.1} parent=47 // pred_check
          %p741 = pneg %p378
        $region66: #{tpu_custom_call.1} parent=47 // pred_check_branch
          %743 = sbr.rel (%p741) target = $region68
        $region67: #{tpu_custom_call.1} parent=47 // pred_region
          %v744 = vld [vmem:[%s325] sm:$0xff]
          %v745 = vld [vmem:[%s325 + $0x8] sm:$0xff]
          %v746 = vld [vmem:[%s367] sm:$0xff]
          %v747 = vld [vmem:[%s367 + $0x8] sm:$0xff]
          %v748 = vadd.f32 %v744, %v746
          %v749 = vadd.f32 %v745, %v747
          %v750 = vld [vmem:[%s4] sm:$0x1]
          %v752 = vlaneseq
          %v753 = vshrl.u32 %v752, 7
          %v754 = vsub.s32 0, %v753
          %v755 = vrot.slane %v750, %v754
          %v757 = vadd.f32 %v748, %v755
          %v758 = vadd.f32 %v749, %v755
          %759 = vadd.xlane.f32.xlu0 %v757
          %v760 = vpop.xlane.xlu0 %759
          %761 = vadd.xlane.f32.xlu0 %v758
          %v762 = vpop.xlane.xlu0 %761
          %v763 = vrcp.pop 128.0
          %v764 = vmul.f32 %v760, %v763
          %v765 = vmul.f32 %v762, %v763
          %v766 = vsub.f32 %v757, %v764
          %v767 = vsub.f32 %v758, %v765
          %v768 = vmul.f32 %v766, %v766
          %v769 = vmul.f32 %v767, %v767
          %770 = vadd.xlane.f32.xlu0 %v768
          %v771 = vpop.xlane.xlu0 %770
          %772 = vadd.xlane.f32.xlu0 %v769
          %v773 = vpop.xlane.xlu0 %772
          %v774 = vmul.f32 %v771, %v763
          %v775 = vmul.f32 %v773, %v763
          %v776 = vadd.f32 %v774, 1e-05
          %v777 = vadd.f32 %v775, 1e-05
          %v778 = vrsqrt.pop %v776
          %v779 = vrsqrt.pop %v777
          %v780 = vmul.f32 %v766, %v778
          %v781 = vmul.f32 %v767, %v779
          %v782 = vld [vmem:[%s5] sm:$0x1]
          %v784 = vlaneseq
          %v785 = vshrl.u32 %v784, 7
          %v786 = vsub.s32 0, %v785
          %v787 = vrot.slane %v782, %v786
          %v789 = vmul.f32 %v780, %v787
          %v790 = vmul.f32 %v781, %v787
          %v791 = vld [vmem:[%s6] sm:$0x1]
          %v793 = vlaneseq
          %v794 = vshrl.u32 %v793, 7
          %v795 = vsub.s32 0, %v794
          %v796 = vrot.slane %v791, %v795
          %v798 = vadd.f32 %v789, %v796
          %v799 = vadd.f32 %v790, %v796
          %800 = vst [vmem:[%s367] sm:$0xff] %v798
          %801 = vst [vmem:[%s367 + $0x8] sm:$0xff] %v799
        $region68: #{tpu_custom_call.1} parent=47 // pred_fallthru
          _
        %s802 = sand.u32 %s212, 1
        %s803 = scalar_lea.sflag [#allocation5], %s802
        %s804 = sand.u32 %s212, 1
        %s805 = smul.addr %s804, 16
        %s806 = scalar_lea.vmem [#allocation9], %s805
        // Predicated region
        $region69: #{tpu_custom_call.1} parent=47 // pred_check
          %p807 = pneg %p222
        $region70: #{tpu_custom_call.1} parent=47 // pred_check_branch
          %809 = sbr.rel (%p807) target = $region72
        $region71: #{tpu_custom_call.1} parent=47 // pred_region
          %s810 = smul.u32 2, %s29
          %s812 = ssub.s32 256, 256
          %813 = vsyncadd %s803, %s812
          %s814 = smul.addr %s810, 128
          %s815 = scalar_lea.hbm %s7, %s814
          %s816 = sshll.u32 %s806, 4
          %s817 = int_to_ptr.vmem [resolvable:$true] %s816
          %822 = dma.vmem_to_hbm [thread:$0]  %s817, 256, %s815, %s803, 128, 128, 8
        $region72: #{tpu_custom_call.1} parent=47 // pred_fallthru
          _
      $region48: #{tpu_custom_call.1} parent=5 // pred_fallthru
        _
      %p823 = scmp.le.s32.totalorder 2, %s20
      // Predicated region
      $region73: #{tpu_custom_call.1} parent=5 // pred_check
        %p824 = pneg %p823
      $region74: #{tpu_custom_call.1} parent=5 // pred_check_branch
        %826 = sbr.rel (%p824) target = $region76
      $region75: #{tpu_custom_call.1} parent=5 // pred_region
        %s827 = ssub.s32 %s20, 2
        // Predicated region
        $region77: #{tpu_custom_call.1} parent=75 // pred_check
          %p828 = pneg %p228
        $region78: #{tpu_custom_call.1} parent=75 // pred_check_branch
          %830 = sbr.rel (%p828) target = $region80
        $region79: #{tpu_custom_call.1} parent=75 // pred_region
          %s831 = sand.u32 %s213, 1
          %s832 = scalar_lea.sflag [#allocation5], %s831
          %s833 = sand.u32 %s213, 1
          %s834 = smul.addr %s833, 16
          %s835 = scalar_lea.vmem [#allocation9], %s834
          %836 = dma.done %s832, 256
        $region80: #{tpu_custom_call.1} parent=75 // pred_fallthru
          _
      $region76: #{tpu_custom_call.1} parent=5 // pred_fallthru
        _
    $region6: #{tpu_custom_call.1} parent=1 // loop_footer
      %s24 = sadd.s32 1, %s20
    $region7: #{tpu_custom_call.1} parent=1 // loop_footer_branch
      %19 = sbr.rel target = $region3
    $region8: #{tpu_custom_call.1} parent=1 // loop_exit
      _
    %837 = vsyncpa [#allocation4], 1
    %s838 = scalar_lea.sflag [#allocation4], 1
    %839 = vsyncpa %s838, 1
    %840 = vsyncpa [#allocation7], 1
    %841 = vsyncpa [#allocation5], 1
    %s842 = scalar_lea.sflag [#allocation5], 1
    %843 = vsyncpa %s842, 1

</llo_original>
